<compile_context>
chip_gen: v7x
topology: tpu7x:2x2x1
jax: 0.10.0
libtpu: 0.0.40
codegen_flags: <defaults>
</compile_context>

<pallas_src>
import functools
import math

import jax
import jax.numpy as jnp
from jax.experimental import pallas as pl
from jax.experimental.pallas import tpu as pltpu


_MXU_DTYPE = jnp.bfloat16    # MXU input dtype (f32 accumulation kept everywhere)
_ACT_DTYPE = jnp.bfloat16    # intermediate activations (q/k/v, attention output)


# --------------------------------------------------------------------------- #
# Small helpers                                                               #
# --------------------------------------------------------------------------- #
def _round_up(x, m):
    return (x + m - 1) // m * m


def _pick_tile(n, target, quantum):
    """Largest multiple of `quantum` that divides `n`, capped at `target`."""
    t = min(target, n)
    t -= t % quantum
    while t >= quantum:
        if n % t == 0:
            return t
        t -= quantum
    return min(n, quantum)


@functools.lru_cache(maxsize=None)
def _vmem_capacity_bytes():
    try:
        cap = int(pltpu.get_tpu_info().vmem_capacity_bytes)
        if cap > 0:
            return cap
    except Exception:
        pass
    return 64 * 1024 * 1024          # conservative default (v7x per-TC physical VMEM)


def _vmem_limit_bytes():
    # Never request full physical VMEM: leave headroom for compiler scratch
    # (critical on v7x where physical VMEM is only 64 MiB per TensorCore).
    return min(_vmem_capacity_bytes() * 3 // 4, 100 * 1024 * 1024)


def _proj_tm_target():
    # Bigger activation tiles on 128-MiB-VMEM chips (v5e/v6e); 256 on v7x.
    return 512 if _vmem_capacity_bytes() >= 100 * 1024 * 1024 else 256


def _heads_per_group(heads, dim_head):
    """Smallest divisor g of `heads` with g*dim_head lane-dense (multiple of 128).
    Falls back to all heads (block width == inner_dim, always a legal block)."""
    for g in range(1, heads + 1):
        if heads % g == 0 and (g * dim_head) % 128 == 0:
            return g
    return heads


# --------------------------------------------------------------------------- #
# Linear projections (multi-output, weights resident in VMEM)                 #
# --------------------------------------------------------------------------- #
def _make_proj_kernel(n_out, n_bias):
    def kernel(*refs):
        x_ref = refs[0]
        w_refs = refs[1:1 + n_out]
        b_refs = refs[1 + n_out:1 + n_out + n_bias]
        o_refs = refs[1 + n_out + n_bias:]
        x = x_ref[...].astype(_MXU_DTYPE)          # activation tile, bf16 on the MXU
        for t in range(n_out):
            acc = jnp.dot(x, w_refs[t][...].astype(_MXU_DTYPE),
                          preferred_element_type=jnp.float32)
            if n_bias:
                acc = acc + b_refs[t][...]
            o_refs[t][...] = acc.astype(o_refs[t].dtype)
    return kernel


def _project(x2d, weights, biases=None, *, out_dtype):
    """Compute [x2d @ w (+ b)] for several weights in one pass over x2d.

    x2d: (M, K); weights: list of (K, Ni) arrays (already (in, out) layout, bf16);
    biases: matching list of (Ni,) f32 or None. Weights/biases use constant
    index_maps (resident across the token grid)."""
    M, K = x2d.shape
    n = len(weights)
    has_bias = biases is not None

    M_pad = _round_up(M, 128)
    if M_pad != M:
        x2d = jnp.pad(x2d, ((0, M_pad - M), (0, 0)))
    tm = _pick_tile(M_pad, _proj_tm_target(), 128)

    in_specs = [pl.BlockSpec((tm, K), lambda i: (i, 0))]
    args = [x2d]
    for w in weights:
        in_specs.append(pl.BlockSpec((K, w.shape[1]), lambda i: (0, 0)))
        args.append(w)
    if has_bias:
        for bvec in biases:
            in_specs.append(pl.BlockSpec((1, bvec.shape[0]), lambda i: (0, 0)))
            args.append(bvec.reshape(1, -1).astype(jnp.float32))

    out_shape = tuple(jax.ShapeDtypeStruct((M_pad, w.shape[1]), out_dtype)
                      for w in weights)
    out_specs = tuple(pl.BlockSpec((tm, w.shape[1]), lambda i: (i, 0))
                      for w in weights)

    outs = pl.pallas_call(
        _make_proj_kernel(n, n if has_bias else 0),
        out_shape=out_shape,
        grid_spec=pltpu.PrefetchScalarGridSpec(
            num_scalar_prefetch=0,
            grid=(M_pad // tm,),
            in_specs=in_specs,
            out_specs=out_specs,
        ),
        compiler_params=pltpu.CompilerParams(
            dimension_semantics=("parallel",),
            vmem_limit_bytes=_vmem_limit_bytes(),
        ),
    )(*args)
    if not isinstance(outs, (tuple, list)):
        outs = (outs,)
    if M_pad != M:
        outs = tuple(o[:M] for o in outs)
    return tuple(outs)


# --------------------------------------------------------------------------- #
# Flash attention (memory-efficient attention), head axis folded into grid    #
# --------------------------------------------------------------------------- #
def _mea_fwd_kernel(q_ref, k_ref, v_ref, o_ref, m_sc, l_sc, acc_sc, *,
                    scale, dim_head, hpg, tk, kv_len, need_mask):
    kv = pl.program_id(3)

    @pl.when(kv == 0)
    def _():
        m_sc[...] = jnp.full_like(m_sc, -jnp.inf)
        l_sc[...] = jnp.zeros_like(l_sc)
        acc_sc[...] = jnp.zeros_like(acc_sc)

    if need_mask:
        col = kv * tk + jax.lax.broadcasted_iota(jnp.int32, (1, tk), 1)
        col_valid = col < kv_len

    q_all = q_ref[0]      # (tq, hpg*D) bf16
    k_all = k_ref[0]      # (tk, hpg*D) bf16
    v_all = v_ref[0]      # (tk, hpg*D) bf16

    D = dim_head
    for g in range(hpg):
        q = q_all[:, g * D:(g + 1) * D]
        k = k_all[:, g * D:(g + 1) * D]
        v = v_all[:, g * D:(g + 1) * D]

        # s = (q @ k^T) * scale with f32 accumulation on the MXU.
        s = jax.lax.dot_general(
            q, k, (((1,), (1,)), ((), ())), preferred_element_type=jnp.float32
        ) * scale
        if need_mask:
            s = jnp.where(col_valid, s, -jnp.inf)

        m_prev = m_sc[g]                                          # (tq, 1)
        m_new = jnp.maximum(m_prev, s.max(axis=-1, keepdims=True))
        alpha = jnp.exp(m_prev - m_new)
        # exp in bf16 (faster EUP on v6e/v7x); l/acc accumulate in f32.
        p = jnp.exp((s - m_new).astype(_MXU_DTYPE))               # (tq, tk) bf16
        l_sc[g] = alpha * l_sc[g] + jnp.sum(p, axis=-1, keepdims=True,
                                            dtype=jnp.float32)
        acc_sc[g] = alpha * acc_sc[g] + jnp.dot(
            p, v, preferred_element_type=jnp.float32)
        m_sc[g] = m_new

    @pl.when(kv == pl.num_programs(3) - 1)
    def _():
        inv = pl.reciprocal(l_sc[...], approx=True)               # (hpg, tq, 1)
        res = acc_sc[...] * inv                                   # (hpg, tq, D)
        if hpg > 1:
            res = jnp.concatenate([res[g] for g in range(hpg)], axis=-1)
        else:
            res = res[0]
        o_ref[0] = res.astype(o_ref.dtype)


def _flash_attention(q, k, v, *, dim_head, hpg, kv_len, scale,
                     tq_target=256, tk_target=1024):
    """q: (b, Lq, inner), k/v: (b, Lk, inner); head h occupies columns
    [h*dim_head, (h+1)*dim_head). Lq/Lk are multiples of 128; kv positions >=
    kv_len are zero padding and masked in-kernel. Returns (b, Lq, inner)."""
    b, Lq, inner = q.shape
    Lk = k.shape[1]
    gw = hpg * dim_head                 # head-group width (lane-dense or == inner)
    n_hg = inner // gw

    tq = _pick_tile(Lq, tq_target, 128)
    tk = _pick_tile(Lk, tk_target, 128)
    need_mask = (kv_len != Lk)

    kernel = functools.partial(
        _mea_fwd_kernel, scale=scale, dim_head=dim_head, hpg=hpg,
        tk=tk, kv_len=kv_len, need_mask=need_mask)

    return pl.pallas_call(
        kernel,
        out_shape=jax.ShapeDtypeStruct((b, Lq, inner), q.dtype),
        grid_spec=pltpu.PrefetchScalarGridSpec(
            num_scalar_prefetch=0,
            grid=(b, n_hg, Lq // tq, Lk // tk),
            in_specs=[
                pl.BlockSpec((1, tq, gw), lambda bb, hg, i, j: (bb, i, hg)),
                pl.BlockSpec((1, tk, gw), lambda bb, hg, i, j: (bb, j, hg)),
                pl.BlockSpec((1, tk, gw), lambda bb, hg, i, j: (bb, j, hg)),
            ],
            out_specs=pl.BlockSpec((1, tq, gw), lambda bb, hg, i, j: (bb, i, hg)),
            scratch_shapes=[
                pltpu.VMEM((hpg, tq, 1), jnp.float32),          # running max
                pltpu.VMEM((hpg, tq, 1), jnp.float32),          # running denom
                pltpu.VMEM((hpg, tq, dim_head), jnp.float32),   # output accumulator
            ],
        ),
        compiler_params=pltpu.CompilerParams(
            dimension_semantics=("parallel", "parallel", "parallel", "arbitrary"),
            vmem_limit_bytes=_vmem_limit_bytes(),
        ),
    )(q, k, v)


# --------------------------------------------------------------------------- #
# Full module forward                                                         #
# --------------------------------------------------------------------------- #
def prepare_params(wq, wk, wv, wo, bo, *, param_dtype=jnp.bfloat16):
    """One-time weight prep (do at parameter-load time, not per call):
    PyTorch (out, in) -> (in, out) layout, matmul weights cast to the MXU dtype."""
    return {
        "wq": jnp.asarray(wq).T.astype(param_dtype),
        "wk": jnp.asarray(wk).T.astype(param_dtype),
        "wv": jnp.asarray(wv).T.astype(param_dtype),
        "wo": jnp.asarray(wo).T.astype(param_dtype),
        "bo": jnp.asarray(bo).astype(jnp.float32),
    }


def memory_efficient_cross_attention(x, params, *, heads, dim_head,
                                     context=None, mask=None):
    """Forward pass of MemoryEfficientCrossAttention.

    x: (b, seq_q, query_dim); context: (b, seq_kv, context_dim) or None.
    params: output of prepare_params(). to_out Dropout has p=0 -> identity.
    """
    if mask is not None:
        # TODO(synk): the `mask is not None` path raises NotImplementedError in the
        # original module as well, so it is intentionally not implemented here.
        raise NotImplementedError("mask is not supported (matches original module)")

    b, sq, query_dim = x.shape
    inner = heads * dim_head
    scale = 1.0 / math.sqrt(dim_head)
    hpg = _heads_per_group(heads, dim_head)

    self_attn = context is None
    ctx = x if self_attn else context
    sk = ctx.shape[1]

    # Pad the token axes to multiples of 128 once, up front: projection and
    # attention tiles then divide exactly, and zero-padded rows project to
    # exactly-zero k/v rows (q/k/v have no bias), so only a kv column mask is
    # needed inside the attention kernel.
    Lq = _round_up(sq, 128)
    x_p = x if Lq == sq else jnp.pad(x, ((0, 0), (0, Lq - sq), (0, 0)))

    if self_attn:
        Lk = Lq
        q2d, k2d, v2d = _project(
            x_p.reshape(b * Lq, query_dim),
            [params["wq"], params["wk"], params["wv"]],
            out_dtype=_ACT_DTYPE)
    else:
        Lk = _round_up(sk, 128)
        ctx_p = ctx if Lk == sk else jnp.pad(ctx, ((0, 0), (0, Lk - sk), (0, 0)))
        (q2d,) = _project(x_p.reshape(b * Lq, query_dim), [params["wq"]],
                          out_dtype=_ACT_DTYPE)
        k2d, v2d = _project(ctx_p.reshape(b * Lk, ctx.shape[-1]),
                            [params["wk"], params["wv"]],
                            out_dtype=_ACT_DTYPE)

    # Reshapes are free (row-major); no head split/merge transposes anywhere.
    q = q2d.reshape(b, Lq, inner)
    k = k2d.reshape(b, Lk, inner)
    v = v2d.reshape(b, Lk, inner)

    o = _flash_attention(q, k, v, dim_head=dim_head, hpg=hpg,
                         kv_len=sk, scale=scale)

    # (b, Lq, heads*dim_head) is already the merged-head layout expected by to_out.
    (out2d,) = _project(o.reshape(b * Lq, inner), [params["wo"]],
                        biases=[params["bo"]], out_dtype=x.dtype)
    out = out2d.reshape(b, Lq, query_dim)
    return out if Lq == sq else out[:, :sq, :]


# --------------------------------------------------------------------------- #
# Pure-JAX reference (exact f32 softmax)                                      #
# --------------------------------------------------------------------------- #
def _reference(x, wq, wk, wv, wo, bo, *, heads, dim_head, context=None):
    context = x if context is None else context
    q = x @ wq.T
    k = context @ wk.T
    v = context @ wv.T
    b, sq, _ = q.shape
    sk = k.shape[1]

    def split(t, s):
        return t.reshape(b, s, heads, dim_head).transpose(0, 2, 1, 3)

    qh, kh, vh = split(q, sq), split(k, sk), split(v, sk)
    s = jnp.einsum("bhqd,bhkd->bhqk", qh, kh) / math.sqrt(dim_head)
    p = jax.nn.softmax(s, axis=-1)
    o = jnp.einsum("bhqk,bhkd->bhqd", p, vh)
    o = o.transpose(0, 2, 1, 3).reshape(b, sq, heads * dim_head)
    return o @ wo.T + bo


if __name__ == "__main__":
    batch, seq, query_dim, heads, dim_head = 2, 8, 32, 2, 16
    seq_kv, context_dim = 5, 48
    inner_dim = heads * dim_head

    key = jax.random.PRNGKey(0)
    kx, kq, kk, kv_, ko, kb, kc, kk2, kv2 = jax.random.split(key, 9)

    x = jax.random.normal(kx, (batch, seq, query_dim), dtype=jnp.float32)
    ctx = jax.random.normal(kc, (batch, seq_kv, context_dim), dtype=jnp.float32)

    def linear_weight(k, out_f, in_f):
        bound = 1.0 / math.sqrt(in_f)
        return jax.random.uniform(k, (out_f, in_f), minval=-bound, maxval=bound,
                                  dtype=jnp.float32)

    # PyTorch (out, in) layout weights.
    wq = linear_weight(kq, inner_dim, query_dim)    # to_q (bias=False)
    wk = linear_weight(kk, inner_dim, query_dim)    # to_k (bias=False)
    wv = linear_weight(kv_, inner_dim, query_dim)   # to_v (bias=False)
    wo = linear_weight(ko, query_dim, inner_dim)    # to_out[0]
    bo = jax.random.uniform(kb, (query_dim,),
                            minval=-1.0 / math.sqrt(inner_dim),
                            maxval=1.0 / math.sqrt(inner_dim), dtype=jnp.float32)
    # Cross-attention k/v weights (context_dim != query_dim).
    wk_x = linear_weight(kk2, inner_dim, context_dim)
    wv_x = linear_weight(kv2, inner_dim, context_dim)

    tol = dict(atol=2e-2, rtol=2e-2)    # bf16 MXU inputs / bf16 intermediate activations

    # --- self-attention (context=None) ---
    params = prepare_params(wq, wk, wv, wo, bo)
    out = memory_efficient_cross_attention(
        x, params, heads=heads, dim_head=dim_head, context=None)
    out = jax.block_until_ready(out)
    ref = _reference(x, wq, wk, wv, wo, bo, heads=heads, dim_head=dim_head)
    assert out.shape == (batch, seq, query_dim)
    assert jnp.allclose(out, ref, **tol), "self-attention mismatch vs reference"

    # --- cross-attention (exercises padded + masked kv path) ---
    params_x = prepare_params(wq, wk_x, wv_x, wo, bo)
    out_x = memory_efficient_cross_attention(
        x, params_x, heads=heads, dim_head=dim_head, context=ctx)
    out_x = jax.block_until_ready(out_x)
    ref_x = _reference(x, wq, wk_x, wv_x, wo, bo, heads=heads,
                       dim_head=dim_head, context=ctx)
    assert out_x.shape == (batch, seq, query_dim)
    assert jnp.allclose(out_x, ref_x, **tol), "cross-attention mismatch vs reference"

    print("KERNEL_OK")
</pallas_src>

<mosaic_0001>
module attributes {stable_mosaic.version = 11 : i64} {
  func.func @kernel(%arg0: i32, %arg1: memref<256x32xf32, #tpu.memory_space<vmem>>, %arg2: memref<32x32xbf16, #tpu.memory_space<vmem>>, %arg3: memref<32x32xbf16, #tpu.memory_space<vmem>>, %arg4: memref<32x32xbf16, #tpu.memory_space<vmem>>, %arg5: memref<256x32xbf16, #tpu.memory_space<vmem>>, %arg6: memref<256x32xbf16, #tpu.memory_space<vmem>>, %arg7: memref<256x32xbf16, #tpu.memory_space<vmem>>) attributes {dimension_semantics = [#tpu.dimension_semantics<parallel>], iteration_bounds = array<i64: 1>, scalar_prefetch = 0 : i64, scratch_operands = 0 : i64, tpu.core_type = #tpu.core_type<tc>, window_params = [{transform_indices = @transform_0, window_bounds = array<i64: 256, 32>}, {pipeline_mode = #tpu.pipeline_mode<synchronous>, transform_indices = @transform_1, window_bounds = array<i64: 32, 32>}, {pipeline_mode = #tpu.pipeline_mode<synchronous>, transform_indices = @transform_2, window_bounds = array<i64: 32, 32>}, {pipeline_mode = #tpu.pipeline_mode<synchronous>, transform_indices = @transform_3, window_bounds = array<i64: 32, 32>}, {transform_indices = @transform_4, window_bounds = array<i64: 256, 32>}, {transform_indices = @transform_5, window_bounds = array<i64: 256, 32>}, {transform_indices = @transform_6, window_bounds = array<i64: 256, 32>}]} {
    %c0 = arith.constant 0 : index
    %c0_0 = arith.constant 0 : index
    %0 = vector.load %arg1[%c0, %c0_0] : memref<256x32xf32, #tpu.memory_space<vmem>>, vector<256x32xf32>
    %1 = arith.truncf %0 : vector<256x32xf32> to vector<256x32xbf16>
    %c0_1 = arith.constant 0 : index
    %c0_2 = arith.constant 0 : index
    %2 = vector.load %arg2[%c0_1, %c0_2] : memref<32x32xbf16, #tpu.memory_space<vmem>>, vector<32x32xbf16>
    %cst = arith.constant dense<0.000000e+00> : vector<256x32xf32>
    %3 = tpu.matmul %1, %2, %cst {dimension_numbers = #tpu.dot_dimension_numbers<[1], [0], [0], [1], [0, 0, 1, 1], [], []>} : vector<256x32xbf16>, vector<32x32xbf16>, vector<256x32xf32> -> vector<256x32xf32>
    %4 = arith.truncf %3 : vector<256x32xf32> to vector<256x32xbf16>
    %c0_3 = arith.constant 0 : index
    %c0_4 = arith.constant 0 : index
    %5 = vector.load %arg5[%c0_3, %c0_4] : memref<256x32xbf16, #tpu.memory_space<vmem>>, vector<256x32xbf16>
    tpu.vector_store %arg5[%c0_3, %c0_4], %4 {strides = array<i32>} : memref<256x32xbf16, #tpu.memory_space<vmem>>, vector<256x32xbf16>,
    %c0_5 = arith.constant 0 : index
    %c0_6 = arith.constant 0 : index
    %6 = vector.load %arg3[%c0_5, %c0_6] : memref<32x32xbf16, #tpu.memory_space<vmem>>, vector<32x32xbf16>
    %cst_7 = arith.constant dense<0.000000e+00> : vector<256x32xf32>
    %7 = tpu.matmul %1, %6, %cst_7 {dimension_numbers = #tpu.dot_dimension_numbers<[1], [0], [0], [1], [0, 0, 1, 1], [], []>} : vector<256x32xbf16>, vector<32x32xbf16>, vector<256x32xf32> -> vector<256x32xf32>
    %8 = arith.truncf %7 : vector<256x32xf32> to vector<256x32xbf16>
    %c0_8 = arith.constant 0 : index
    %c0_9 = arith.constant 0 : index
    %9 = vector.load %arg6[%c0_8, %c0_9] : memref<256x32xbf16, #tpu.memory_space<vmem>>, vector<256x32xbf16>
    tpu.vector_store %arg6[%c0_8, %c0_9], %8 {strides = array<i32>} : memref<256x32xbf16, #tpu.memory_space<vmem>>, vector<256x32xbf16>,
    %c0_10 = arith.constant 0 : index
    %c0_11 = arith.constant 0 : index
    %10 = vector.load %arg4[%c0_10, %c0_11] : memref<32x32xbf16, #tpu.memory_space<vmem>>, vector<32x32xbf16>
    %cst_12 = arith.constant dense<0.000000e+00> : vector<256x32xf32>
    %11 = tpu.matmul %1, %10, %cst_12 {dimension_numbers = #tpu.dot_dimension_numbers<[1], [0], [0], [1], [0, 0, 1, 1], [], []>} : vector<256x32xbf16>, vector<32x32xbf16>, vector<256x32xf32> -> vector<256x32xf32>
    %12 = arith.truncf %11 : vector<256x32xf32> to vector<256x32xbf16>
    %c0_13 = arith.constant 0 : index
    %c0_14 = arith.constant 0 : index
    %13 = vector.load %arg7[%c0_13, %c0_14] : memref<256x32xbf16, #tpu.memory_space<vmem>>, vector<256x32xbf16>
    tpu.vector_store %arg7[%c0_13, %c0_14], %12 {strides = array<i32>} : memref<256x32xbf16, #tpu.memory_space<vmem>>, vector<256x32xbf16>,
    return
  }
  func.func @transform_0(%arg0: i32) -> (i32, i32) {
    %c0_i32 = arith.constant 0 : i32
    %c0_i32_0 = arith.constant 0 : i32
    return %arg0, %c0_i32 : i32, i32
  }
  func.func @transform_1(%arg0: i32) -> (i32, i32) {
    %c0_i32 = arith.constant 0 : i32
    %c0_i32_0 = arith.constant 0 : i32
    %c0_i32_1 = arith.constant 0 : i32
    return %c0_i32, %c0_i32_0 : i32, i32
  }
  func.func @transform_2(%arg0: i32) -> (i32, i32) {
    %c0_i32 = arith.constant 0 : i32
    %c0_i32_0 = arith.constant 0 : i32
    %c0_i32_1 = arith.constant 0 : i32
    return %c0_i32, %c0_i32_0 : i32, i32
  }
  func.func @transform_3(%arg0: i32) -> (i32, i32) {
    %c0_i32 = arith.constant 0 : i32
    %c0_i32_0 = arith.constant 0 : i32
    %c0_i32_1 = arith.constant 0 : i32
    return %c0_i32, %c0_i32_0 : i32, i32
  }
  func.func @transform_4(%arg0: i32) -> (i32, i32) {
    %c0_i32 = arith.constant 0 : i32
    %c0_i32_0 = arith.constant 0 : i32
    return %arg0, %c0_i32 : i32, i32
  }
  func.func @transform_5(%arg0: i32) -> (i32, i32) {
    %c0_i32 = arith.constant 0 : i32
    %c0_i32_0 = arith.constant 0 : i32
    return %arg0, %c0_i32 : i32, i32
  }
  func.func @transform_6(%arg0: i32) -> (i32, i32) {
    %c0_i32 = arith.constant 0 : i32
    %c0_i32_0 = arith.constant 0 : i32
    return %arg0, %c0_i32 : i32, i32
  }
}

</mosaic_0001>

<llo_original>
// kernel: tpu_custom_call.1
$region0: #{tpu_custom_call.1}
  #allocation0 [shape = 'u32[]', space=smem, size = 0x4, offset = 0x4, fixed_abs, tag = 'smem constant byte address 0x4 - core index']
  #allocation1 [shape = 'u32[144,128]{1,0:T(1,128)}', space=vmem, size = 0x12000, scoped, tag = 'internal scratch']
  %s0 = inlined_call_operand.vmem [shape: f32[256,32], index: 0, kind: input, shape index: {}]
  %s1 = inlined_call_operand.vmem [shape: bf16[32,32], index: 1, kind: input, shape index: {}]
  %s2 = inlined_call_operand.vmem [shape: bf16[32,32], index: 2, kind: input, shape index: {}]
  %s3 = inlined_call_operand.vmem [shape: bf16[32,32], index: 3, kind: input, shape index: {}]
  %s4 = inlined_call_operand.vmem [shape: bf16[256,32], index: 4, kind: output, shape index: {0}]
  %s5 = inlined_call_operand.vmem [shape: bf16[256,32], index: 5, kind: output, shape index: {1}]
  %s6 = inlined_call_operand.vmem [shape: bf16[256,32], index: 6, kind: output, shape index: {2}]
  %7 = xla_tuple %s4, %s5, %s6
  %s8 = sld [smem:[#allocation0]]
  $region42: #{tpu_custom_call.1} parent=0
    _
  %s10 = ssub.s32 1, %s8
  %s11 = scalar_select 0, %s10, %s8
  // Predicated region
  $region2: #{tpu_custom_call.1} parent=0 // pred_check
    _
  $region3: #{tpu_custom_call.1} parent=0 // pred_check_branch
    %13 = sbr.rel (0) target = $region5
  $region4: #{tpu_custom_call.1} parent=0 // pred_region
    _
  $region5: #{tpu_custom_call.1} parent=0 // pred_fallthru
    _
  // Predicated region
  $region6: #{tpu_custom_call.1} parent=0 // pred_check
    _
  $region7: #{tpu_custom_call.1} parent=0 // pred_check_branch
    %15 = sbr.rel (0) target = $region9
  $region8: #{tpu_custom_call.1} parent=0 // pred_region
    _
  $region9: #{tpu_custom_call.1} parent=0 // pred_fallthru
    _
  // Predicated region
  $region10: #{tpu_custom_call.1} parent=0 // pred_check
    _
  $region11: #{tpu_custom_call.1} parent=0 // pred_check_branch
    %17 = sbr.rel (0) target = $region13
  $region12: #{tpu_custom_call.1} parent=0 // pred_region
    _
  $region13: #{tpu_custom_call.1} parent=0 // pred_fallthru
    _
  // Predicated region
  $region14: #{tpu_custom_call.1} parent=0 // pred_check
    _
  $region15: #{tpu_custom_call.1} parent=0 // pred_check_branch
    %19 = sbr.rel (0) target = $region17
  $region16: #{tpu_custom_call.1} parent=0 // pred_region
    _
  $region17: #{tpu_custom_call.1} parent=0 // pred_fallthru
    _
  %v21 = vld [vmem:[%s0] sm:$0xff]
  %v22 = vld [vmem:[%s0 + $0x8] sm:$0xff]
  %v23 = vld [vmem:[%s0 + $0x10] sm:$0xff]
  %v24 = vld [vmem:[%s0 + $0x18] sm:$0xff]
  %v25 = vld [vmem:[%s0 + $0x20] sm:$0xff]
  %v26 = vld [vmem:[%s0 + $0x28] sm:$0xff]
  %v27 = vld [vmem:[%s0 + $0x30] sm:$0xff]
  %v28 = vld [vmem:[%s0 + $0x38] sm:$0xff]
  %v29 = vld [vmem:[%s0 + $0x40] sm:$0xff]
  %v30 = vld [vmem:[%s0 + $0x48] sm:$0xff]
  %v31 = vld [vmem:[%s0 + $0x50] sm:$0xff]
  %v32 = vld [vmem:[%s0 + $0x58] sm:$0xff]
  %v33 = vld [vmem:[%s0 + $0x60] sm:$0xff]
  %v34 = vld [vmem:[%s0 + $0x68] sm:$0xff]
  %v35 = vld [vmem:[%s0 + $0x70] sm:$0xff]
  %v36 = vld [vmem:[%s0 + $0x78] sm:$0xff]
  %v37 = vld [vmem:[%s0 + $0x80] sm:$0xff]
  %v38 = vld [vmem:[%s0 + $0x88] sm:$0xff]
  %v39 = vld [vmem:[%s0 + $0x90] sm:$0xff]
  %v40 = vld [vmem:[%s0 + $0x98] sm:$0xff]
  %v41 = vld [vmem:[%s0 + $0xa0] sm:$0xff]
  %v42 = vld [vmem:[%s0 + $0xa8] sm:$0xff]
  %v43 = vld [vmem:[%s0 + $0xb0] sm:$0xff]
  %v44 = vld [vmem:[%s0 + $0xb8] sm:$0xff]
  %v45 = vld [vmem:[%s0 + $0xc0] sm:$0xff]
  %v46 = vld [vmem:[%s0 + $0xc8] sm:$0xff]
  %v47 = vld [vmem:[%s0 + $0xd0] sm:$0xff]
  %v48 = vld [vmem:[%s0 + $0xd8] sm:$0xff]
  %v49 = vld [vmem:[%s0 + $0xe0] sm:$0xff]
  %v50 = vld [vmem:[%s0 + $0xe8] sm:$0xff]
  %v51 = vld [vmem:[%s0 + $0xf0] sm:$0xff]
  %v52 = vld [vmem:[%s0 + $0xf8] sm:$0xff]
  %v53 = vpack.c.bf16 %v22, %v21
  %v54 = vpack.c.bf16 %v24, %v23
  %v55 = vpack.c.bf16 %v26, %v25
  %v56 = vpack.c.bf16 %v28, %v27
  %v57 = vpack.c.bf16 %v30, %v29
  %v58 = vpack.c.bf16 %v32, %v31
  %v59 = vpack.c.bf16 %v34, %v33
  %v60 = vpack.c.bf16 %v36, %v35
  %v61 = vpack.c.bf16 %v38, %v37
  %v62 = vpack.c.bf16 %v40, %v39
  %v63 = vpack.c.bf16 %v42, %v41
  %v64 = vpack.c.bf16 %v44, %v43
  %v65 = vpack.c.bf16 %v46, %v45
  %v66 = vpack.c.bf16 %v48, %v47
  %v67 = vpack.c.bf16 %v50, %v49
  %v68 = vpack.c.bf16 %v52, %v51
  %v69 = vld [vmem:[%s1] sm:$0xf]
  %v70 = vld [vmem:[%s1 + $0x4] sm:$0xf]
  %v71 = vld [vmem:[%s1 + $0x8] sm:$0xf]
  %v72 = vld [vmem:[%s1 + $0xc] sm:$0xf]
  %v77 = vunpack.c.l.b16 %v69
  %v78 = vunpack.c.l.b16 %v70
  %v79 = vunpack.c.l.b16 %v71
  %v80 = vunpack.c.l.b16 %v72
  %v81 = vpack.c.b16 %v78, %v77
  %v82 = vpack.c.b16 %v80, %v79
  %vm85 = vcmask 261120
  %v87 = vsel %vm85, %v53, 0
  %v90 = vsel %vm85, %v54, 0
  %v93 = vsel %vm85, %v55, 0
  %v96 = vsel %vm85, %v56, 0
  %v99 = vsel %vm85, %v57, 0
  %v102 = vsel %vm85, %v58, 0
  %v105 = vsel %vm85, %v59, 0
  %v108 = vsel %vm85, %v60, 0
  %v111 = vsel %vm85, %v61, 0
  %v114 = vsel %vm85, %v62, 0
  %v117 = vsel %vm85, %v63, 0
  %v120 = vsel %vm85, %v64, 0
  %v123 = vsel %vm85, %v65, 0
  %v126 = vsel %vm85, %v66, 0
  %v129 = vsel %vm85, %v67, 0
  %v132 = vsel %vm85, %v68, 0
  %134 = vmatprep.subr.bf16.mxu0 0
  %135 = vmatpush1.bf16.msra.mxu0 %v81
  %136 = vmatprep.subr.bf16.mxu0 0
  %137 = vmatpush1.bf16.msra.mxu0 %v82
  %138 = vmatprep.subr.bf16.mxu0 0
  %139 = vmatpush1.bf16.msra.mxu0 0
  %140 = vmatprep.subr.bf16.mxu0 0
  %141 = vmatpush1.bf16.msra.mxu0 0
  %142 = vmatprep.subr.bf16.mxu0 0
  %143 = vmatpush1.bf16.msra.mxu0 0
  %144 = vmatprep.subr.bf16.mxu0 0
  %145 = vmatpush1.bf16.msra.mxu0 0
  %146 = vmatprep.subr.bf16.mxu0 0
  %147 = vmatpush1.bf16.msra.mxu0 0
  %148 = vmatprep.subr.bf16.mxu0 0
  %149 = vmatpush1.bf16.msra.mxu0 0
  %150 = vmatprep.subr.bf16.mxu0 0
  %151 = vmatpush1.bf16.msra.mxu0 0
  %152 = vmatprep.subr.bf16.mxu0 0
  %153 = vmatpush1.bf16.msra.mxu0 0
  %154 = vmatprep.subr.bf16.mxu0 0
  %155 = vmatpush1.bf16.msra.mxu0 0
  %156 = vmatprep.subr.bf16.mxu0 0
  %157 = vmatpush1.bf16.msra.mxu0 0
  %158 = vmatprep.subr.bf16.mxu0 0
  %159 = vmatpush1.bf16.msra.mxu0 0
  %160 = vmatprep.subr.bf16.mxu0 0
  %161 = vmatpush1.bf16.msra.mxu0 0
  %162 = vmatprep.subr.bf16.mxu0 0
  %163 = vmatpush1.bf16.msra.mxu0 0
  %164 = vmatprep.subr.bf16.mxu0 0
  %165 = vmatpush1.bf16.msra.mxu0 0
  %166 = vmatprep.mubr.bf16.mxu0 0
  %167 = vmatmul.mubr.bf16.gmra.mrb[0].mxu0 %v87
  %v168 = vpop.f32.mrb[0].mxu0
  %v169 = vadd.f32 0.0, %v168
  %v170 = vpop.f32.mrb[0].mxu0
  %v171 = vpop.f32.mrb[0].mxu0
  %v172 = vadd.f32 0.0, %v171
  %v173 = vpop.f32.mrb[0].mxu0
  %174 = vmatprep.mubr.bf16.mxu0 0
  %175 = vmatmul.mubr.bf16.gmra.mrb[0].mxu0 %v90
  %v176 = vpop.f32.mrb[0].mxu0
  %v177 = vadd.f32 0.0, %v176
  %v178 = vpop.f32.mrb[0].mxu0
  %v179 = vpop.f32.mrb[0].mxu0
  %v180 = vadd.f32 0.0, %v179
  %v181 = vpop.f32.mrb[0].mxu0
  %182 = vmatprep.mubr.bf16.mxu0 0
  %183 = vmatmul.mubr.bf16.gmra.mrb[0].mxu0 %v93
  %v184 = vpop.f32.mrb[0].mxu0
  %v185 = vadd.f32 0.0, %v184
  %v186 = vpop.f32.mrb[0].mxu0
  %v187 = vpop.f32.mrb[0].mxu0
  %v188 = vadd.f32 0.0, %v187
  %v189 = vpop.f32.mrb[0].mxu0
  %190 = vmatprep.mubr.bf16.mxu0 0
  %191 = vmatmul.mubr.bf16.gmra.mrb[0].mxu0 %v96
  %v192 = vpop.f32.mrb[0].mxu0
  %v193 = vadd.f32 0.0, %v192
  %v194 = vpop.f32.mrb[0].mxu0
  %v195 = vpop.f32.mrb[0].mxu0
  %v196 = vadd.f32 0.0, %v195
  %v197 = vpop.f32.mrb[0].mxu0
  %198 = vmatprep.mubr.bf16.mxu0 0
  %199 = vmatmul.mubr.bf16.gmra.mrb[0].mxu0 %v99
  %v200 = vpop.f32.mrb[0].mxu0
  %v201 = vadd.f32 0.0, %v200
  %v202 = vpop.f32.mrb[0].mxu0
  %v203 = vpop.f32.mrb[0].mxu0
  %v204 = vadd.f32 0.0, %v203
  %v205 = vpop.f32.mrb[0].mxu0
  %206 = vmatprep.mubr.bf16.mxu0 0
  %207 = vmatmul.mubr.bf16.gmra.mrb[0].mxu0 %v102
  %v208 = vpop.f32.mrb[0].mxu0
  %v209 = vadd.f32 0.0, %v208
  %v210 = vpop.f32.mrb[0].mxu0
  %v211 = vpop.f32.mrb[0].mxu0
  %v212 = vadd.f32 0.0, %v211
  %v213 = vpop.f32.mrb[0].mxu0
  %214 = vmatprep.mubr.bf16.mxu0 0
  %215 = vmatmul.mubr.bf16.gmra.mrb[0].mxu0 %v105
  %v216 = vpop.f32.mrb[0].mxu0
  %v217 = vadd.f32 0.0, %v216
  %v218 = vpop.f32.mrb[0].mxu0
  %v219 = vpop.f32.mrb[0].mxu0
  %v220 = vadd.f32 0.0, %v219
  %v221 = vpop.f32.mrb[0].mxu0
  %222 = vmatprep.mubr.bf16.mxu0 0
  %223 = vmatmul.mubr.bf16.gmra.mrb[0].mxu0 %v108
  %v224 = vpop.f32.mrb[0].mxu0
  %v225 = vadd.f32 0.0, %v224
  %v226 = vpop.f32.mrb[0].mxu0
  %v227 = vpop.f32.mrb[0].mxu0
  %v228 = vadd.f32 0.0, %v227
  %v229 = vpop.f32.mrb[0].mxu0
  %230 = vmatprep.mubr.bf16.mxu0 0
  %231 = vmatmul.mubr.bf16.gmra.mrb[0].mxu0 %v111
  %v232 = vpop.f32.mrb[0].mxu0
  %v233 = vadd.f32 0.0, %v232
  %v234 = vpop.f32.mrb[0].mxu0
  %v235 = vpop.f32.mrb[0].mxu0
  %v236 = vadd.f32 0.0, %v235
  %v237 = vpop.f32.mrb[0].mxu0
  %238 = vmatprep.mubr.bf16.mxu0 0
  %239 = vmatmul.mubr.bf16.gmra.mrb[0].mxu0 %v114
  %v240 = vpop.f32.mrb[0].mxu0
  %v241 = vadd.f32 0.0, %v240
  %v242 = vpop.f32.mrb[0].mxu0
  %v243 = vpop.f32.mrb[0].mxu0
  %v244 = vadd.f32 0.0, %v243
  %v245 = vpop.f32.mrb[0].mxu0
  %246 = vmatprep.mubr.bf16.mxu0 0
  %247 = vmatmul.mubr.bf16.gmra.mrb[0].mxu0 %v117
  %v248 = vpop.f32.mrb[0].mxu0
  %v249 = vadd.f32 0.0, %v248
  %v250 = vpop.f32.mrb[0].mxu0
  %v251 = vpop.f32.mrb[0].mxu0
  %v252 = vadd.f32 0.0, %v251
  %v253 = vpop.f32.mrb[0].mxu0
  %254 = vmatprep.mubr.bf16.mxu0 0
  %255 = vmatmul.mubr.bf16.gmra.mrb[0].mxu0 %v120
  %v256 = vpop.f32.mrb[0].mxu0
  %v257 = vadd.f32 0.0, %v256
  %v258 = vpop.f32.mrb[0].mxu0
  %v259 = vpop.f32.mrb[0].mxu0
  %v260 = vadd.f32 0.0, %v259
  %v261 = vpop.f32.mrb[0].mxu0
  %262 = vmatprep.mubr.bf16.mxu0 0
  %263 = vmatmul.mubr.bf16.gmra.mrb[0].mxu0 %v123
  %v264 = vpop.f32.mrb[0].mxu0
  %v265 = vadd.f32 0.0, %v264
  %v266 = vpop.f32.mrb[0].mxu0
  %v267 = vpop.f32.mrb[0].mxu0
  %v268 = vadd.f32 0.0, %v267
  %v269 = vpop.f32.mrb[0].mxu0
  %270 = vmatprep.mubr.bf16.mxu0 0
  %271 = vmatmul.mubr.bf16.gmra.mrb[0].mxu0 %v126
  %v272 = vpop.f32.mrb[0].mxu0
  %v273 = vadd.f32 0.0, %v272
  %v274 = vpop.f32.mrb[0].mxu0
  %v275 = vpop.f32.mrb[0].mxu0
  %v276 = vadd.f32 0.0, %v275
  %v277 = vpop.f32.mrb[0].mxu0
  %278 = vmatprep.mubr.bf16.mxu0 0
  %279 = vmatmul.mubr.bf16.gmra.mrb[0].mxu0 %v129
  %v280 = vpop.f32.mrb[0].mxu0
  %v281 = vadd.f32 0.0, %v280
  %v282 = vpop.f32.mrb[0].mxu0
  %v283 = vpop.f32.mrb[0].mxu0
  %v284 = vadd.f32 0.0, %v283
  %v285 = vpop.f32.mrb[0].mxu0
  %286 = vmatprep.mubr.bf16.mxu0 0
  %287 = vmatmul.mubr.bf16.gmra.mrb[0].mxu0 %v132
  %v288 = vpop.f32.mrb[0].mxu0
  %v289 = vadd.f32 0.0, %v288
  %v290 = vpop.f32.mrb[0].mxu0
  %v291 = vpop.f32.mrb[0].mxu0
  %v292 = vadd.f32 0.0, %v291
  %v293 = vpop.f32.mrb[0].mxu0
  %294 = vdwg.mxu0
  %v295 = vpack.c.bf16 %v172, %v169
  %v296 = vpack.c.bf16 %v180, %v177
  %v297 = vpack.c.bf16 %v188, %v185
  %v298 = vpack.c.bf16 %v196, %v193
  %v299 = vpack.c.bf16 %v204, %v201
  %v300 = vpack.c.bf16 %v212, %v209
  %v301 = vpack.c.bf16 %v220, %v217
  %v302 = vpack.c.bf16 %v228, %v225
  %v303 = vpack.c.bf16 %v236, %v233
  %v304 = vpack.c.bf16 %v244, %v241
  %v305 = vpack.c.bf16 %v252, %v249
  %v306 = vpack.c.bf16 %v260, %v257
  %v307 = vpack.c.bf16 %v268, %v265
  %v308 = vpack.c.bf16 %v276, %v273
  %v309 = vpack.c.bf16 %v284, %v281
  %v310 = vpack.c.bf16 %v292, %v289
  %v327 = vunpack.c.l.b16 %v295
  %v328 = vunpack.c.h.b16 %v295
  %v329 = vunpack.c.l.b16 %v296
  %v330 = vunpack.c.h.b16 %v296
  %v331 = vunpack.c.l.b16 %v297
  %v332 = vunpack.c.h.b16 %v297
  %v333 = vunpack.c.l.b16 %v298
  %v334 = vunpack.c.h.b16 %v298
  %v335 = vunpack.c.l.b16 %v299
  %v336 = vunpack.c.h.b16 %v299
  %v337 = vunpack.c.l.b16 %v300
  %v338 = vunpack.c.h.b16 %v300
  %v339 = vunpack.c.l.b16 %v301
  %v340 = vunpack.c.h.b16 %v301
  %v341 = vunpack.c.l.b16 %v302
  %v342 = vunpack.c.h.b16 %v302
  %v343 = vunpack.c.l.b16 %v303
  %v344 = vunpack.c.h.b16 %v303
  %v345 = vunpack.c.l.b16 %v304
  %v346 = vunpack.c.h.b16 %v304
  %v347 = vunpack.c.l.b16 %v305
  %v348 = vunpack.c.h.b16 %v305
  %v349 = vunpack.c.l.b16 %v306
  %v350 = vunpack.c.h.b16 %v306
  %v351 = vunpack.c.l.b16 %v307
  %v352 = vunpack.c.h.b16 %v307
  %v353 = vunpack.c.l.b16 %v308
  %v354 = vunpack.c.h.b16 %v308
  %v355 = vunpack.c.l.b16 %v309
  %v356 = vunpack.c.h.b16 %v309
  %v357 = vunpack.c.l.b16 %v310
  %v358 = vunpack.c.h.b16 %v310
  %v359 = vpack.c.b16 %v327, %v327
  %v360 = vpack.c.b16 %v328, %v328
  %v361 = vpack.c.b16 %v329, %v329
  %v362 = vpack.c.b16 %v330, %v330
  %v363 = vpack.c.b16 %v331, %v331
  %v364 = vpack.c.b16 %v332, %v332
  %v365 = vpack.c.b16 %v333, %v333
  %v366 = vpack.c.b16 %v334, %v334
  %v367 = vpack.c.b16 %v335, %v335
  %v368 = vpack.c.b16 %v336, %v336
  %v369 = vpack.c.b16 %v337, %v337
  %v370 = vpack.c.b16 %v338, %v338
  %v371 = vpack.c.b16 %v339, %v339
  %v372 = vpack.c.b16 %v340, %v340
  %v373 = vpack.c.b16 %v341, %v341
  %v374 = vpack.c.b16 %v342, %v342
  %v375 = vpack.c.b16 %v343, %v343
  %v376 = vpack.c.b16 %v344, %v344
  %v377 = vpack.c.b16 %v345, %v345
  %v378 = vpack.c.b16 %v346, %v346
  %v379 = vpack.c.b16 %v347, %v347
  %v380 = vpack.c.b16 %v348, %v348
  %v381 = vpack.c.b16 %v349, %v349
  %v382 = vpack.c.b16 %v350, %v350
  %v383 = vpack.c.b16 %v351, %v351
  %v384 = vpack.c.b16 %v352, %v352
  %v385 = vpack.c.b16 %v353, %v353
  %v386 = vpack.c.b16 %v354, %v354
  %v387 = vpack.c.b16 %v355, %v355
  %v388 = vpack.c.b16 %v356, %v356
  %v389 = vpack.c.b16 %v357, %v357
  %v390 = vpack.c.b16 %v358, %v358
  %vm423 = vcmask 257024
  %424 = vst.msk [vmem:[%s4] sm:$0xf] %vm423, %v359
  %425 = vst.msk [vmem:[%s4 + $0x4] sm:$0xf] %vm423, %v360
  %426 = vst.msk [vmem:[%s4 + $0x8] sm:$0xf] %vm423, %v361
  %427 = vst.msk [vmem:[%s4 + $0xc] sm:$0xf] %vm423, %v362
  %428 = vst.msk [vmem:[%s4 + $0x10] sm:$0xf] %vm423, %v363
  %429 = vst.msk [vmem:[%s4 + $0x14] sm:$0xf] %vm423, %v364
  %430 = vst.msk [vmem:[%s4 + $0x18] sm:$0xf] %vm423, %v365
  %431 = vst.msk [vmem:[%s4 + $0x1c] sm:$0xf] %vm423, %v366
  %432 = vst.msk [vmem:[%s4 + $0x20] sm:$0xf] %vm423, %v367
  %433 = vst.msk [vmem:[%s4 + $0x24] sm:$0xf] %vm423, %v368
  %434 = vst.msk [vmem:[%s4 + $0x28] sm:$0xf] %vm423, %v369
  %435 = vst.msk [vmem:[%s4 + $0x2c] sm:$0xf] %vm423, %v370
  %436 = vst.msk [vmem:[%s4 + $0x30] sm:$0xf] %vm423, %v371
  %437 = vst.msk [vmem:[%s4 + $0x34] sm:$0xf] %vm423, %v372
  %438 = vst.msk [vmem:[%s4 + $0x38] sm:$0xf] %vm423, %v373
  %439 = vst.msk [vmem:[%s4 + $0x3c] sm:$0xf] %vm423, %v374
  %440 = vst.msk [vmem:[%s4 + $0x40] sm:$0xf] %vm423, %v375
  %441 = vst.msk [vmem:[%s4 + $0x44] sm:$0xf] %vm423, %v376
  %442 = vst.msk [vmem:[%s4 + $0x48] sm:$0xf] %vm423, %v377
  %443 = vst.msk [vmem:[%s4 + $0x4c] sm:$0xf] %vm423, %v378
  %444 = vst.msk [vmem:[%s4 + $0x50] sm:$0xf] %vm423, %v379
  %445 = vst.msk [vmem:[%s4 + $0x54] sm:$0xf] %vm423, %v380
  %446 = vst.msk [vmem:[%s4 + $0x58] sm:$0xf] %vm423, %v381
  %447 = vst.msk [vmem:[%s4 + $0x5c] sm:$0xf] %vm423, %v382
  %448 = vst.msk [vmem:[%s4 + $0x60] sm:$0xf] %vm423, %v383
  %449 = vst.msk [vmem:[%s4 + $0x64] sm:$0xf] %vm423, %v384
  %450 = vst.msk [vmem:[%s4 + $0x68] sm:$0xf] %vm423, %v385
  %451 = vst.msk [vmem:[%s4 + $0x6c] sm:$0xf] %vm423, %v386
  %452 = vst.msk [vmem:[%s4 + $0x70] sm:$0xf] %vm423, %v387
  %453 = vst.msk [vmem:[%s4 + $0x74] sm:$0xf] %vm423, %v388
  %454 = vst.msk [vmem:[%s4 + $0x78] sm:$0xf] %vm423, %v389
  %455 = vst.msk [vmem:[%s4 + $0x7c] sm:$0xf] %vm423, %v390
  %v456 = vld [vmem:[%s2] sm:$0xf]
  %v457 = vld [vmem:[%s2 + $0x4] sm:$0xf]
  %v458 = vld [vmem:[%s2 + $0x8] sm:$0xf]
  %v459 = vld [vmem:[%s2 + $0xc] sm:$0xf]
  %v464 = vunpack.c.l.b16 %v456
  %v465 = vunpack.c.l.b16 %v457
  %v466 = vunpack.c.l.b16 %v458
  %v467 = vunpack.c.l.b16 %v459
  %v468 = vpack.c.b16 %v465, %v464
  %v469 = vpack.c.b16 %v467, %v466
  %472 = vmatprep.subr.bf16.mxu0 0
  %473 = vmatpush1.bf16.msra.mxu0 %v468
  %474 = vmatprep.subr.bf16.mxu0 0
  %475 = vmatpush1.bf16.msra.mxu0 %v469
  %476 = vmatprep.subr.bf16.mxu0 0
  %477 = vmatpush1.bf16.msra.mxu0 0
  %478 = vmatprep.subr.bf16.mxu0 0
  %479 = vmatpush1.bf16.msra.mxu0 0
  %480 = vmatprep.subr.bf16.mxu0 0
  %481 = vmatpush1.bf16.msra.mxu0 0
  %482 = vmatprep.subr.bf16.mxu0 0
  %483 = vmatpush1.bf16.msra.mxu0 0
  %484 = vmatprep.subr.bf16.mxu0 0
  %485 = vmatpush1.bf16.msra.mxu0 0
  %486 = vmatprep.subr.bf16.mxu0 0
  %487 = vmatpush1.bf16.msra.mxu0 0
  %488 = vmatprep.subr.bf16.mxu0 0
  %489 = vmatpush1.bf16.msra.mxu0 0
  %490 = vmatprep.subr.bf16.mxu0 0
  %491 = vmatpush1.bf16.msra.mxu0 0
  %492 = vmatprep.subr.bf16.mxu0 0
  %493 = vmatpush1.bf16.msra.mxu0 0
  %494 = vmatprep.subr.bf16.mxu0 0
  %495 = vmatpush1.bf16.msra.mxu0 0
  %496 = vmatprep.subr.bf16.mxu0 0
  %497 = vmatpush1.bf16.msra.mxu0 0
  %498 = vmatprep.subr.bf16.mxu0 0
  %499 = vmatpush1.bf16.msra.mxu0 0
  %500 = vmatprep.subr.bf16.mxu0 0
  %501 = vmatpush1.bf16.msra.mxu0 0
  %502 = vmatprep.subr.bf16.mxu0 0
  %503 = vmatpush1.bf16.msra.mxu0 0
  %504 = vmatprep.mubr.bf16.mxu0 0
  %505 = vmatmul.mubr.bf16.gmra.mrb[0].mxu0 %v87
  %v506 = vpop.f32.mrb[0].mxu0
  %v507 = vadd.f32 0.0, %v506
  %v508 = vpop.f32.mrb[0].mxu0
  %v509 = vpop.f32.mrb[0].mxu0
  %v510 = vadd.f32 0.0, %v509
  %v511 = vpop.f32.mrb[0].mxu0
  %512 = vmatprep.mubr.bf16.mxu0 0
  %513 = vmatmul.mubr.bf16.gmra.mrb[0].mxu0 %v90
  %v514 = vpop.f32.mrb[0].mxu0
  %v515 = vadd.f32 0.0, %v514
  %v516 = vpop.f32.mrb[0].mxu0
  %v517 = vpop.f32.mrb[0].mxu0
  %v518 = vadd.f32 0.0, %v517
  %v519 = vpop.f32.mrb[0].mxu0
  %520 = vmatprep.mubr.bf16.mxu0 0
  %521 = vmatmul.mubr.bf16.gmra.mrb[0].mxu0 %v93
  %v522 = vpop.f32.mrb[0].mxu0
  %v523 = vadd.f32 0.0, %v522
  %v524 = vpop.f32.mrb[0].mxu0
  %v525 = vpop.f32.mrb[0].mxu0
  %v526 = vadd.f32 0.0, %v525
  %v527 = vpop.f32.mrb[0].mxu0
  %528 = vmatprep.mubr.bf16.mxu0 0
  %529 = vmatmul.mubr.bf16.gmra.mrb[0].mxu0 %v96
  %v530 = vpop.f32.mrb[0].mxu0
  %v531 = vadd.f32 0.0, %v530
  %v532 = vpop.f32.mrb[0].mxu0
  %v533 = vpop.f32.mrb[0].mxu0
  %v534 = vadd.f32 0.0, %v533
  %v535 = vpop.f32.mrb[0].mxu0
  %536 = vmatprep.mubr.bf16.mxu0 0
  %537 = vmatmul.mubr.bf16.gmra.mrb[0].mxu0 %v99
  %v538 = vpop.f32.mrb[0].mxu0
  %v539 = vadd.f32 0.0, %v538
  %v540 = vpop.f32.mrb[0].mxu0
  %v541 = vpop.f32.mrb[0].mxu0
  %v542 = vadd.f32 0.0, %v541
  %v543 = vpop.f32.mrb[0].mxu0
  %544 = vmatprep.mubr.bf16.mxu0 0
  %545 = vmatmul.mubr.bf16.gmra.mrb[0].mxu0 %v102
  %v546 = vpop.f32.mrb[0].mxu0
  %v547 = vadd.f32 0.0, %v546
  %v548 = vpop.f32.mrb[0].mxu0
  %v549 = vpop.f32.mrb[0].mxu0
  %v550 = vadd.f32 0.0, %v549
  %v551 = vpop.f32.mrb[0].mxu0
  %552 = vmatprep.mubr.bf16.mxu0 0
  %553 = vmatmul.mubr.bf16.gmra.mrb[0].mxu0 %v105
  %v554 = vpop.f32.mrb[0].mxu0
  %v555 = vadd.f32 0.0, %v554
  %v556 = vpop.f32.mrb[0].mxu0
  %v557 = vpop.f32.mrb[0].mxu0
  %v558 = vadd.f32 0.0, %v557
  %v559 = vpop.f32.mrb[0].mxu0
  %560 = vmatprep.mubr.bf16.mxu0 0
  %561 = vmatmul.mubr.bf16.gmra.mrb[0].mxu0 %v108
  %v562 = vpop.f32.mrb[0].mxu0
  %v563 = vadd.f32 0.0, %v562
  %v564 = vpop.f32.mrb[0].mxu0
  %v565 = vpop.f32.mrb[0].mxu0
  %v566 = vadd.f32 0.0, %v565
  %v567 = vpop.f32.mrb[0].mxu0
  %568 = vmatprep.mubr.bf16.mxu0 0
  %569 = vmatmul.mubr.bf16.gmra.mrb[0].mxu0 %v111
  %v570 = vpop.f32.mrb[0].mxu0
  %v571 = vadd.f32 0.0, %v570
  %v572 = vpop.f32.mrb[0].mxu0
  %v573 = vpop.f32.mrb[0].mxu0
  %v574 = vadd.f32 0.0, %v573
  %v575 = vpop.f32.mrb[0].mxu0
  %576 = vmatprep.mubr.bf16.mxu0 0
  %577 = vmatmul.mubr.bf16.gmra.mrb[0].mxu0 %v114
  %v578 = vpop.f32.mrb[0].mxu0
  %v579 = vadd.f32 0.0, %v578
  %v580 = vpop.f32.mrb[0].mxu0
  %v581 = vpop.f32.mrb[0].mxu0
  %v582 = vadd.f32 0.0, %v581
  %v583 = vpop.f32.mrb[0].mxu0
  %584 = vmatprep.mubr.bf16.mxu0 0
  %585 = vmatmul.mubr.bf16.gmra.mrb[0].mxu0 %v117
  %v586 = vpop.f32.mrb[0].mxu0
  %v587 = vadd.f32 0.0, %v586
  %v588 = vpop.f32.mrb[0].mxu0
  %v589 = vpop.f32.mrb[0].mxu0
  %v590 = vadd.f32 0.0, %v589
  %v591 = vpop.f32.mrb[0].mxu0
  %592 = vmatprep.mubr.bf16.mxu0 0
  %593 = vmatmul.mubr.bf16.gmra.mrb[0].mxu0 %v120
  %v594 = vpop.f32.mrb[0].mxu0
  %v595 = vadd.f32 0.0, %v594
  %v596 = vpop.f32.mrb[0].mxu0
  %v597 = vpop.f32.mrb[0].mxu0
  %v598 = vadd.f32 0.0, %v597
  %v599 = vpop.f32.mrb[0].mxu0
  %600 = vmatprep.mubr.bf16.mxu0 0
  %601 = vmatmul.mubr.bf16.gmra.mrb[0].mxu0 %v123
  %v602 = vpop.f32.mrb[0].mxu0
  %v603 = vadd.f32 0.0, %v602
  %v604 = vpop.f32.mrb[0].mxu0
  %v605 = vpop.f32.mrb[0].mxu0
  %v606 = vadd.f32 0.0, %v605
  %v607 = vpop.f32.mrb[0].mxu0
  %608 = vmatprep.mubr.bf16.mxu0 0
  %609 = vmatmul.mubr.bf16.gmra.mrb[0].mxu0 %v126
  %v610 = vpop.f32.mrb[0].mxu0
  %v611 = vadd.f32 0.0, %v610
  %v612 = vpop.f32.mrb[0].mxu0
  %v613 = vpop.f32.mrb[0].mxu0
  %v614 = vadd.f32 0.0, %v613
  %v615 = vpop.f32.mrb[0].mxu0
  %616 = vmatprep.mubr.bf16.mxu0 0
  %617 = vmatmul.mubr.bf16.gmra.mrb[0].mxu0 %v129
  %v618 = vpop.f32.mrb[0].mxu0
  %v619 = vadd.f32 0.0, %v618
  %v620 = vpop.f32.mrb[0].mxu0
  %v621 = vpop.f32.mrb[0].mxu0
  %v622 = vadd.f32 0.0, %v621
  %v623 = vpop.f32.mrb[0].mxu0
  %624 = vmatprep.mubr.bf16.mxu0 0
  %625 = vmatmul.mubr.bf16.gmra.mrb[0].mxu0 %v132
  %v626 = vpop.f32.mrb[0].mxu0
  %v627 = vadd.f32 0.0, %v626
  %v628 = vpop.f32.mrb[0].mxu0
  %v629 = vpop.f32.mrb[0].mxu0
  %v630 = vadd.f32 0.0, %v629
  %v631 = vpop.f32.mrb[0].mxu0
  %632 = vdwg.mxu0
  %v633 = vpack.c.bf16 %v510, %v507
  %v634 = vpack.c.bf16 %v518, %v515
  %v635 = vpack.c.bf16 %v526, %v523
  %v636 = vpack.c.bf16 %v534, %v531
  %v637 = vpack.c.bf16 %v542, %v539
  %v638 = vpack.c.bf16 %v550, %v547
  %v639 = vpack.c.bf16 %v558, %v555
  %v640 = vpack.c.bf16 %v566, %v563
  %v641 = vpack.c.bf16 %v574, %v571
  %v642 = vpack.c.bf16 %v582, %v579
  %v643 = vpack.c.bf16 %v590, %v587
  %v644 = vpack.c.bf16 %v598, %v595
  %v645 = vpack.c.bf16 %v606, %v603
  %v646 = vpack.c.bf16 %v614, %v611
  %v647 = vpack.c.bf16 %v622, %v619
  %v648 = vpack.c.bf16 %v630, %v627
  %v665 = vunpack.c.l.b16 %v633
  %v666 = vunpack.c.h.b16 %v633
  %v667 = vunpack.c.l.b16 %v634
  %v668 = vunpack.c.h.b16 %v634
  %v669 = vunpack.c.l.b16 %v635
  %v670 = vunpack.c.h.b16 %v635
  %v671 = vunpack.c.l.b16 %v636
  %v672 = vunpack.c.h.b16 %v636
  %v673 = vunpack.c.l.b16 %v637
  %v674 = vunpack.c.h.b16 %v637
  %v675 = vunpack.c.l.b16 %v638
  %v676 = vunpack.c.h.b16 %v638
  %v677 = vunpack.c.l.b16 %v639
  %v678 = vunpack.c.h.b16 %v639
  %v679 = vunpack.c.l.b16 %v640
  %v680 = vunpack.c.h.b16 %v640
  %v681 = vunpack.c.l.b16 %v641
  %v682 = vunpack.c.h.b16 %v641
  %v683 = vunpack.c.l.b16 %v642
  %v684 = vunpack.c.h.b16 %v642
  %v685 = vunpack.c.l.b16 %v643
  %v686 = vunpack.c.h.b16 %v643
  %v687 = vunpack.c.l.b16 %v644
  %v688 = vunpack.c.h.b16 %v644
  %v689 = vunpack.c.l.b16 %v645
  %v690 = vunpack.c.h.b16 %v645
  %v691 = vunpack.c.l.b16 %v646
  %v692 = vunpack.c.h.b16 %v646
  %v693 = vunpack.c.l.b16 %v647
  %v694 = vunpack.c.h.b16 %v647
  %v695 = vunpack.c.l.b16 %v648
  %v696 = vunpack.c.h.b16 %v648
  %v697 = vpack.c.b16 %v665, %v665
  %v698 = vpack.c.b16 %v666, %v666
  %v699 = vpack.c.b16 %v667, %v667
  %v700 = vpack.c.b16 %v668, %v668
  %v701 = vpack.c.b16 %v669, %v669
  %v702 = vpack.c.b16 %v670, %v670
  %v703 = vpack.c.b16 %v671, %v671
  %v704 = vpack.c.b16 %v672, %v672
  %v705 = vpack.c.b16 %v673, %v673
  %v706 = vpack.c.b16 %v674, %v674
  %v707 = vpack.c.b16 %v675, %v675
  %v708 = vpack.c.b16 %v676, %v676
  %v709 = vpack.c.b16 %v677, %v677
  %v710 = vpack.c.b16 %v678, %v678
  %v711 = vpack.c.b16 %v679, %v679
  %v712 = vpack.c.b16 %v680, %v680
  %v713 = vpack.c.b16 %v681, %v681
  %v714 = vpack.c.b16 %v682, %v682
  %v715 = vpack.c.b16 %v683, %v683
  %v716 = vpack.c.b16 %v684, %v684
  %v717 = vpack.c.b16 %v685, %v685
  %v718 = vpack.c.b16 %v686, %v686
  %v719 = vpack.c.b16 %v687, %v687
  %v720 = vpack.c.b16 %v688, %v688
  %v721 = vpack.c.b16 %v689, %v689
  %v722 = vpack.c.b16 %v690, %v690
  %v723 = vpack.c.b16 %v691, %v691
  %v724 = vpack.c.b16 %v692, %v692
  %v725 = vpack.c.b16 %v693, %v693
  %v726 = vpack.c.b16 %v694, %v694
  %v727 = vpack.c.b16 %v695, %v695
  %v728 = vpack.c.b16 %v696, %v696
  %761 = vst.msk [vmem:[%s5] sm:$0xf] %vm423, %v697
  %762 = vst.msk [vmem:[%s5 + $0x4] sm:$0xf] %vm423, %v698
  %763 = vst.msk [vmem:[%s5 + $0x8] sm:$0xf] %vm423, %v699
  %764 = vst.msk [vmem:[%s5 + $0xc] sm:$0xf] %vm423, %v700
  %765 = vst.msk [vmem:[%s5 + $0x10] sm:$0xf] %vm423, %v701
  %766 = vst.msk [vmem:[%s5 + $0x14] sm:$0xf] %vm423, %v702
  %767 = vst.msk [vmem:[%s5 + $0x18] sm:$0xf] %vm423, %v703
  %768 = vst.msk [vmem:[%s5 + $0x1c] sm:$0xf] %vm423, %v704
  %769 = vst.msk [vmem:[%s5 + $0x20] sm:$0xf] %vm423, %v705
  %770 = vst.msk [vmem:[%s5 + $0x24] sm:$0xf] %vm423, %v706
  %771 = vst.msk [vmem:[%s5 + $0x28] sm:$0xf] %vm423, %v707
  %772 = vst.msk [vmem:[%s5 + $0x2c] sm:$0xf] %vm423, %v708
  %773 = vst.msk [vmem:[%s5 + $0x30] sm:$0xf] %vm423, %v709
  %774 = vst.msk [vmem:[%s5 + $0x34] sm:$0xf] %vm423, %v710
  %775 = vst.msk [vmem:[%s5 + $0x38] sm:$0xf] %vm423, %v711
  %776 = vst.msk [vmem:[%s5 + $0x3c] sm:$0xf] %vm423, %v712
  %777 = vst.msk [vmem:[%s5 + $0x40] sm:$0xf] %vm423, %v713
  %778 = vst.msk [vmem:[%s5 + $0x44] sm:$0xf] %vm423, %v714
  %779 = vst.msk [vmem:[%s5 + $0x48] sm:$0xf] %vm423, %v715
  %780 = vst.msk [vmem:[%s5 + $0x4c] sm:$0xf] %vm423, %v716
  %781 = vst.msk [vmem:[%s5 + $0x50] sm:$0xf] %vm423, %v717
  %782 = vst.msk [vmem:[%s5 + $0x54] sm:$0xf] %vm423, %v718
  %783 = vst.msk [vmem:[%s5 + $0x58] sm:$0xf] %vm423, %v719
  %784 = vst.msk [vmem:[%s5 + $0x5c] sm:$0xf] %vm423, %v720
  %785 = vst.msk [vmem:[%s5 + $0x60] sm:$0xf] %vm423, %v721
  %786 = vst.msk [vmem:[%s5 + $0x64] sm:$0xf] %vm423, %v722
  %787 = vst.msk [vmem:[%s5 + $0x68] sm:$0xf] %vm423, %v723
  %788 = vst.msk [vmem:[%s5 + $0x6c] sm:$0xf] %vm423, %v724
  %789 = vst.msk [vmem:[%s5 + $0x70] sm:$0xf] %vm423, %v725
  %790 = vst.msk [vmem:[%s5 + $0x74] sm:$0xf] %vm423, %v726
  %791 = vst.msk [vmem:[%s5 + $0x78] sm:$0xf] %vm423, %v727
  %792 = vst.msk [vmem:[%s5 + $0x7c] sm:$0xf] %vm423, %v728
  %v793 = vld [vmem:[%s3] sm:$0xf]
  %v794 = vld [vmem:[%s3 + $0x4] sm:$0xf]
  %v795 = vld [vmem:[%s3 + $0x8] sm:$0xf]
  %v796 = vld [vmem:[%s3 + $0xc] sm:$0xf]
  %v801 = vunpack.c.l.b16 %v793
  %v802 = vunpack.c.l.b16 %v794
  %v803 = vunpack.c.l.b16 %v795
  %v804 = vunpack.c.l.b16 %v796
  %v805 = vpack.c.b16 %v802, %v801
  %v806 = vpack.c.b16 %v804, %v803
  %809 = vmatprep.subr.bf16.mxu0 0
  %810 = vmatpush1.bf16.msra.mxu0 %v805
  %811 = vmatprep.subr.bf16.mxu0 0
  %812 = vmatpush1.bf16.msra.mxu0 %v806
  %813 = vmatprep.subr.bf16.mxu0 0
  %814 = vmatpush1.bf16.msra.mxu0 0
  %815 = vmatprep.subr.bf16.mxu0 0
  %816 = vmatpush1.bf16.msra.mxu0 0
  %817 = vmatprep.subr.bf16.mxu0 0
  %818 = vmatpush1.bf16.msra.mxu0 0
  %819 = vmatprep.subr.bf16.mxu0 0
  %820 = vmatpush1.bf16.msra.mxu0 0
  %821 = vmatprep.subr.bf16.mxu0 0
  %822 = vmatpush1.bf16.msra.mxu0 0
  %823 = vmatprep.subr.bf16.mxu0 0
  %824 = vmatpush1.bf16.msra.mxu0 0
  %825 = vmatprep.subr.bf16.mxu0 0
  %826 = vmatpush1.bf16.msra.mxu0 0
  %827 = vmatprep.subr.bf16.mxu0 0
  %828 = vmatpush1.bf16.msra.mxu0 0
  %829 = vmatprep.subr.bf16.mxu0 0
  %830 = vmatpush1.bf16.msra.mxu0 0
  %831 = vmatprep.subr.bf16.mxu0 0
  %832 = vmatpush1.bf16.msra.mxu0 0
  %833 = vmatprep.subr.bf16.mxu0 0
  %834 = vmatpush1.bf16.msra.mxu0 0
  %835 = vmatprep.subr.bf16.mxu0 0
  %836 = vmatpush1.bf16.msra.mxu0 0
  %837 = vmatprep.subr.bf16.mxu0 0
  %838 = vmatpush1.bf16.msra.mxu0 0
  %839 = vmatprep.subr.bf16.mxu0 0
  %840 = vmatpush1.bf16.msra.mxu0 0
  %841 = vmatprep.mubr.bf16.mxu0 0
  %842 = vmatmul.mubr.bf16.gmra.mrb[0].mxu0 %v87
  %v843 = vpop.f32.mrb[0].mxu0
  %v844 = vadd.f32 0.0, %v843
  %v845 = vpop.f32.mrb[0].mxu0
  %v846 = vpop.f32.mrb[0].mxu0
  %v847 = vadd.f32 0.0, %v846
  %v848 = vpop.f32.mrb[0].mxu0
  %849 = vmatprep.mubr.bf16.mxu0 0
  %850 = vmatmul.mubr.bf16.gmra.mrb[0].mxu0 %v90
  %v851 = vpop.f32.mrb[0].mxu0
  %v852 = vadd.f32 0.0, %v851
  %v853 = vpop.f32.mrb[0].mxu0
  %v854 = vpop.f32.mrb[0].mxu0
  %v855 = vadd.f32 0.0, %v854
  %v856 = vpop.f32.mrb[0].mxu0
  %857 = vmatprep.mubr.bf16.mxu0 0
  %858 = vmatmul.mubr.bf16.gmra.mrb[0].mxu0 %v93
  %v859 = vpop.f32.mrb[0].mxu0
  %v860 = vadd.f32 0.0, %v859
  %v861 = vpop.f32.mrb[0].mxu0
  %v862 = vpop.f32.mrb[0].mxu0
  %v863 = vadd.f32 0.0, %v862
  %v864 = vpop.f32.mrb[0].mxu0
  %865 = vmatprep.mubr.bf16.mxu0 0
  %866 = vmatmul.mubr.bf16.gmra.mrb[0].mxu0 %v96
  %v867 = vpop.f32.mrb[0].mxu0
  %v868 = vadd.f32 0.0, %v867
  %v869 = vpop.f32.mrb[0].mxu0
  %v870 = vpop.f32.mrb[0].mxu0
  %v871 = vadd.f32 0.0, %v870
  %v872 = vpop.f32.mrb[0].mxu0
  %873 = vmatprep.mubr.bf16.mxu0 0
  %874 = vmatmul.mubr.bf16.gmra.mrb[0].mxu0 %v99
  %v875 = vpop.f32.mrb[0].mxu0
  %v876 = vadd.f32 0.0, %v875
  %v877 = vpop.f32.mrb[0].mxu0
  %v878 = vpop.f32.mrb[0].mxu0
  %v879 = vadd.f32 0.0, %v878
  %v880 = vpop.f32.mrb[0].mxu0
  %881 = vmatprep.mubr.bf16.mxu0 0
  %882 = vmatmul.mubr.bf16.gmra.mrb[0].mxu0 %v102
  %v883 = vpop.f32.mrb[0].mxu0
  %v884 = vadd.f32 0.0, %v883
  %v885 = vpop.f32.mrb[0].mxu0
  %v886 = vpop.f32.mrb[0].mxu0
  %v887 = vadd.f32 0.0, %v886
  %v888 = vpop.f32.mrb[0].mxu0
  %889 = vmatprep.mubr.bf16.mxu0 0
  %890 = vmatmul.mubr.bf16.gmra.mrb[0].mxu0 %v105
  %v891 = vpop.f32.mrb[0].mxu0
  %v892 = vadd.f32 0.0, %v891
  %v893 = vpop.f32.mrb[0].mxu0
  %v894 = vpop.f32.mrb[0].mxu0
  %v895 = vadd.f32 0.0, %v894
  %v896 = vpop.f32.mrb[0].mxu0
  %897 = vmatprep.mubr.bf16.mxu0 0
  %898 = vmatmul.mubr.bf16.gmra.mrb[0].mxu0 %v108
  %v899 = vpop.f32.mrb[0].mxu0
  %v900 = vadd.f32 0.0, %v899
  %v901 = vpop.f32.mrb[0].mxu0
  %v902 = vpop.f32.mrb[0].mxu0
  %v903 = vadd.f32 0.0, %v902
  %v904 = vpop.f32.mrb[0].mxu0
  %905 = vmatprep.mubr.bf16.mxu0 0
  %906 = vmatmul.mubr.bf16.gmra.mrb[0].mxu0 %v111
  %v907 = vpop.f32.mrb[0].mxu0
  %v908 = vadd.f32 0.0, %v907
  %v909 = vpop.f32.mrb[0].mxu0
  %v910 = vpop.f32.mrb[0].mxu0
  %v911 = vadd.f32 0.0, %v910
  %v912 = vpop.f32.mrb[0].mxu0
  %913 = vmatprep.mubr.bf16.mxu0 0
  %914 = vmatmul.mubr.bf16.gmra.mrb[0].mxu0 %v114
  %v915 = vpop.f32.mrb[0].mxu0
  %v916 = vadd.f32 0.0, %v915
  %v917 = vpop.f32.mrb[0].mxu0
  %v918 = vpop.f32.mrb[0].mxu0
  %v919 = vadd.f32 0.0, %v918
  %v920 = vpop.f32.mrb[0].mxu0
  %921 = vmatprep.mubr.bf16.mxu0 0
  %922 = vmatmul.mubr.bf16.gmra.mrb[0].mxu0 %v117
  %v923 = vpop.f32.mrb[0].mxu0
  %v924 = vadd.f32 0.0, %v923
  %v925 = vpop.f32.mrb[0].mxu0
  %v926 = vpop.f32.mrb[0].mxu0
  %v927 = vadd.f32 0.0, %v926
  %v928 = vpop.f32.mrb[0].mxu0
  %929 = vmatprep.mubr.bf16.mxu0 0
  %930 = vmatmul.mubr.bf16.gmra.mrb[0].mxu0 %v120
  %v931 = vpop.f32.mrb[0].mxu0
  %v932 = vadd.f32 0.0, %v931
  %v933 = vpop.f32.mrb[0].mxu0
  %v934 = vpop.f32.mrb[0].mxu0
  %v935 = vadd.f32 0.0, %v934
  %v936 = vpop.f32.mrb[0].mxu0
  %937 = vmatprep.mubr.bf16.mxu0 0
  %938 = vmatmul.mubr.bf16.gmra.mrb[0].mxu0 %v123
  %v939 = vpop.f32.mrb[0].mxu0
  %v940 = vadd.f32 0.0, %v939
  %v941 = vpop.f32.mrb[0].mxu0
  %v942 = vpop.f32.mrb[0].mxu0
  %v943 = vadd.f32 0.0, %v942
  %v944 = vpop.f32.mrb[0].mxu0
  %945 = vmatprep.mubr.bf16.mxu0 0
  %946 = vmatmul.mubr.bf16.gmra.mrb[0].mxu0 %v126
  %v947 = vpop.f32.mrb[0].mxu0
  %v948 = vadd.f32 0.0, %v947
  %v949 = vpop.f32.mrb[0].mxu0
  %v950 = vpop.f32.mrb[0].mxu0
  %v951 = vadd.f32 0.0, %v950
  %v952 = vpop.f32.mrb[0].mxu0
  %953 = vmatprep.mubr.bf16.mxu0 0
  %954 = vmatmul.mubr.bf16.gmra.mrb[0].mxu0 %v129
  %v955 = vpop.f32.mrb[0].mxu0
  %v956 = vadd.f32 0.0, %v955
  %v957 = vpop.f32.mrb[0].mxu0
  %v958 = vpop.f32.mrb[0].mxu0
  %v959 = vadd.f32 0.0, %v958
  %v960 = vpop.f32.mrb[0].mxu0
  %961 = vmatprep.mubr.bf16.mxu0 0
  %962 = vmatmul.mubr.bf16.gmra.mrb[0].mxu0 %v132
  %v963 = vpop.f32.mrb[0].mxu0
  %v964 = vadd.f32 0.0, %v963
  %v965 = vpop.f32.mrb[0].mxu0
  %v966 = vpop.f32.mrb[0].mxu0
  %v967 = vadd.f32 0.0, %v966
  %v968 = vpop.f32.mrb[0].mxu0
  %969 = vdwg.mxu0
  %v970 = vpack.c.bf16 %v847, %v844
  %v971 = vpack.c.bf16 %v855, %v852
  %v972 = vpack.c.bf16 %v863, %v860
  %v973 = vpack.c.bf16 %v871, %v868
  %v974 = vpack.c.bf16 %v879, %v876
  %v975 = vpack.c.bf16 %v887, %v884
  %v976 = vpack.c.bf16 %v895, %v892
  %v977 = vpack.c.bf16 %v903, %v900
  %v978 = vpack.c.bf16 %v911, %v908
  %v979 = vpack.c.bf16 %v919, %v916
  %v980 = vpack.c.bf16 %v927, %v924
  %v981 = vpack.c.bf16 %v935, %v932
  %v982 = vpack.c.bf16 %v943, %v940
  %v983 = vpack.c.bf16 %v951, %v948
  %v984 = vpack.c.bf16 %v959, %v956
  %v985 = vpack.c.bf16 %v967, %v964
  %v1002 = vunpack.c.l.b16 %v970
  %v1003 = vunpack.c.h.b16 %v970
  %v1004 = vunpack.c.l.b16 %v971
  %v1005 = vunpack.c.h.b16 %v971
  %v1006 = vunpack.c.l.b16 %v972
  %v1007 = vunpack.c.h.b16 %v972
  %v1008 = vunpack.c.l.b16 %v973
  %v1009 = vunpack.c.h.b16 %v973
  %v1010 = vunpack.c.l.b16 %v974
  %v1011 = vunpack.c.h.b16 %v974
  %v1012 = vunpack.c.l.b16 %v975
  %v1013 = vunpack.c.h.b16 %v975
  %v1014 = vunpack.c.l.b16 %v976
  %v1015 = vunpack.c.h.b16 %v976
  %v1016 = vunpack.c.l.b16 %v977
  %v1017 = vunpack.c.h.b16 %v977
  %v1018 = vunpack.c.l.b16 %v978
  %v1019 = vunpack.c.h.b16 %v978
  %v1020 = vunpack.c.l.b16 %v979
  %v1021 = vunpack.c.h.b16 %v979
  %v1022 = vunpack.c.l.b16 %v980
  %v1023 = vunpack.c.h.b16 %v980
  %v1024 = vunpack.c.l.b16 %v981
  %v1025 = vunpack.c.h.b16 %v981
  %v1026 = vunpack.c.l.b16 %v982
  %v1027 = vunpack.c.h.b16 %v982
  %v1028 = vunpack.c.l.b16 %v983
  %v1029 = vunpack.c.h.b16 %v983
  %v1030 = vunpack.c.l.b16 %v984
  %v1031 = vunpack.c.h.b16 %v984
  %v1032 = vunpack.c.l.b16 %v985
  %v1033 = vunpack.c.h.b16 %v985
  %v1034 = vpack.c.b16 %v1002, %v1002
  %v1035 = vpack.c.b16 %v1003, %v1003
  %v1036 = vpack.c.b16 %v1004, %v1004
  %v1037 = vpack.c.b16 %v1005, %v1005
  %v1038 = vpack.c.b16 %v1006, %v1006
  %v1039 = vpack.c.b16 %v1007, %v1007
  %v1040 = vpack.c.b16 %v1008, %v1008
  %v1041 = vpack.c.b16 %v1009, %v1009
  %v1042 = vpack.c.b16 %v1010, %v1010
  %v1043 = vpack.c.b16 %v1011, %v1011
  %v1044 = vpack.c.b16 %v1012, %v1012
  %v1045 = vpack.c.b16 %v1013, %v1013
  %v1046 = vpack.c.b16 %v1014, %v1014
  %v1047 = vpack.c.b16 %v1015, %v1015
  %v1048 = vpack.c.b16 %v1016, %v1016
  %v1049 = vpack.c.b16 %v1017, %v1017
  %v1050 = vpack.c.b16 %v1018, %v1018
  %v1051 = vpack.c.b16 %v1019, %v1019
  %v1052 = vpack.c.b16 %v1020, %v1020
  %v1053 = vpack.c.b16 %v1021, %v1021
  %v1054 = vpack.c.b16 %v1022, %v1022
  %v1055 = vpack.c.b16 %v1023, %v1023
  %v1056 = vpack.c.b16 %v1024, %v1024
  %v1057 = vpack.c.b16 %v1025, %v1025
  %v1058 = vpack.c.b16 %v1026, %v1026
  %v1059 = vpack.c.b16 %v1027, %v1027
  %v1060 = vpack.c.b16 %v1028, %v1028
  %v1061 = vpack.c.b16 %v1029, %v1029
  %v1062 = vpack.c.b16 %v1030, %v1030
  %v1063 = vpack.c.b16 %v1031, %v1031
  %v1064 = vpack.c.b16 %v1032, %v1032
  %v1065 = vpack.c.b16 %v1033, %v1033
  %1098 = vst.msk [vmem:[%s6] sm:$0xf] %vm423, %v1034
  %1099 = vst.msk [vmem:[%s6 + $0x4] sm:$0xf] %vm423, %v1035
  %1100 = vst.msk [vmem:[%s6 + $0x8] sm:$0xf] %vm423, %v1036
  %1101 = vst.msk [vmem:[%s6 + $0xc] sm:$0xf] %vm423, %v1037
  %1102 = vst.msk [vmem:[%s6 + $0x10] sm:$0xf] %vm423, %v1038
  %1103 = vst.msk [vmem:[%s6 + $0x14] sm:$0xf] %vm423, %v1039
  %1104 = vst.msk [vmem:[%s6 + $0x18] sm:$0xf] %vm423, %v1040
  %1105 = vst.msk [vmem:[%s6 + $0x1c] sm:$0xf] %vm423, %v1041
  %1106 = vst.msk [vmem:[%s6 + $0x20] sm:$0xf] %vm423, %v1042
  %1107 = vst.msk [vmem:[%s6 + $0x24] sm:$0xf] %vm423, %v1043
  %1108 = vst.msk [vmem:[%s6 + $0x28] sm:$0xf] %vm423, %v1044
  %1109 = vst.msk [vmem:[%s6 + $0x2c] sm:$0xf] %vm423, %v1045
  %1110 = vst.msk [vmem:[%s6 + $0x30] sm:$0xf] %vm423, %v1046
  %1111 = vst.msk [vmem:[%s6 + $0x34] sm:$0xf] %vm423, %v1047
  %1112 = vst.msk [vmem:[%s6 + $0x38] sm:$0xf] %vm423, %v1048
  %1113 = vst.msk [vmem:[%s6 + $0x3c] sm:$0xf] %vm423, %v1049
  %1114 = vst.msk [vmem:[%s6 + $0x40] sm:$0xf] %vm423, %v1050
  %1115 = vst.msk [vmem:[%s6 + $0x44] sm:$0xf] %vm423, %v1051
  %1116 = vst.msk [vmem:[%s6 + $0x48] sm:$0xf] %vm423, %v1052
  %1117 = vst.msk [vmem:[%s6 + $0x4c] sm:$0xf] %vm423, %v1053
  %1118 = vst.msk [vmem:[%s6 + $0x50] sm:$0xf] %vm423, %v1054
  %1119 = vst.msk [vmem:[%s6 + $0x54] sm:$0xf] %vm423, %v1055
  %1120 = vst.msk [vmem:[%s6 + $0x58] sm:$0xf] %vm423, %v1056
  %1121 = vst.msk [vmem:[%s6 + $0x5c] sm:$0xf] %vm423, %v1057
  %1122 = vst.msk [vmem:[%s6 + $0x60] sm:$0xf] %vm423, %v1058
  %1123 = vst.msk [vmem:[%s6 + $0x64] sm:$0xf] %vm423, %v1059
  %1124 = vst.msk [vmem:[%s6 + $0x68] sm:$0xf] %vm423, %v1060
  %1125 = vst.msk [vmem:[%s6 + $0x6c] sm:$0xf] %vm423, %v1061
  %1126 = vst.msk [vmem:[%s6 + $0x70] sm:$0xf] %vm423, %v1062
  %1127 = vst.msk [vmem:[%s6 + $0x74] sm:$0xf] %vm423, %v1063
  %1128 = vst.msk [vmem:[%s6 + $0x78] sm:$0xf] %vm423, %v1064
  %1129 = vst.msk [vmem:[%s6 + $0x7c] sm:$0xf] %vm423, %v1065
  // Predicated region
  $region18: #{tpu_custom_call.1} parent=0 // pred_check
    _
  $region19: #{tpu_custom_call.1} parent=0 // pred_check_branch
    %1131 = sbr.rel (0) target = $region21
  $region20: #{tpu_custom_call.1} parent=0 // pred_region
    _
  $region21: #{tpu_custom_call.1} parent=0 // pred_fallthru
    _
  // Predicated region
  $region22: #{tpu_custom_call.1} parent=0 // pred_check
    _
  $region23: #{tpu_custom_call.1} parent=0 // pred_check_branch
    %1133 = sbr.rel (0) target = $region25
  $region24: #{tpu_custom_call.1} parent=0 // pred_region
    _
  $region25: #{tpu_custom_call.1} parent=0 // pred_fallthru
    _
  // Predicated region
  $region26: #{tpu_custom_call.1} parent=0 // pred_check
    _
  $region27: #{tpu_custom_call.1} parent=0 // pred_check_branch
    %1135 = sbr.rel (0) target = $region29
  $region28: #{tpu_custom_call.1} parent=0 // pred_region
    _
  $region29: #{tpu_custom_call.1} parent=0 // pred_fallthru
    _
  // Predicated region
  $region30: #{tpu_custom_call.1} parent=0 // pred_check
    _
  $region31: #{tpu_custom_call.1} parent=0 // pred_check_branch
    %1137 = sbr.rel (0) target = $region33
  $region32: #{tpu_custom_call.1} parent=0 // pred_region
    _
  $region33: #{tpu_custom_call.1} parent=0 // pred_fallthru
    _
  // Predicated region
  $region34: #{tpu_custom_call.1} parent=0 // pred_check
    _
  $region35: #{tpu_custom_call.1} parent=0 // pred_check_branch
    %1139 = sbr.rel (0) target = $region37
  $region36: #{tpu_custom_call.1} parent=0 // pred_region
    _
  $region37: #{tpu_custom_call.1} parent=0 // pred_fallthru
    _
  // Predicated region
  $region38: #{tpu_custom_call.1} parent=0 // pred_check
    _
  $region39: #{tpu_custom_call.1} parent=0 // pred_check_branch
    %1141 = sbr.rel (0) target = $region41
  $region40: #{tpu_custom_call.1} parent=0 // pred_region
    _
  $region41: #{tpu_custom_call.1} parent=0 // pred_fallthru
    _

</llo_original>
